<compile_context>
chip_gen: v7x
topology: tpu7x:2x2x1
jax: 0.10.0
libtpu: 0.0.40
codegen_flags: <defaults>
</compile_context>

<pallas_src>
import jax
import jax.numpy as jnp
import numpy as np
from jax import lax
from jax.experimental import pallas as pl
from jax.experimental.pallas import tpu as pltpu


def _round_up(x, m):
    return (x + m - 1) // m * m


def _pose_sse_kernel(pa_ref, ga_ref, acc_ref):
    """Accumulate elementwise squared rotation-matrix differences.

    pa_ref / ga_ref : (3, rows_blk, 128) f32  axis-angle x/y/z, dense rows/lanes
                      (flattened joint index = row*128 + lane).
    acc_ref         : (rows_blk, 128) f32 output block; its block index does not
                      change along grid axis 1, so it stays VMEM-resident and acts
                      as the accumulator (init at r==0, written back at the end).
    """
    r = pl.program_id(1)

    @pl.when(r == 0)
    def _init():
        acc_ref[...] = jnp.zeros_like(acc_ref)

    eps = jnp.float32(1e-8)

    def quat(ref):
        ax = ref[0]
        ay = ref[1]
        az = ref[2]
        # VIBE batch_rodrigues: angle = ||theta + 1e-8||, axis = theta / angle
        axe, aye, aze = ax + eps, ay + eps, az + eps
        ss = axe * axe + aye * aye + aze * aze
        inv_angle = lax.rsqrt(ss)              # one EUP op (was sqrt + reciprocal)
        angle = ss * inv_angle                 # == sqrt(ss)
        half = angle * jnp.float32(0.5)
        w = jnp.cos(half)
        s = jnp.sin(half)
        x = s * (ax * inv_angle)
        y = s * (ay * inv_angle)
        z = s * (az * inv_angle)
        # quat2mat renormalization (kept for fidelity with the reference).
        inv_qn = lax.rsqrt(w * w + x * x + y * y + z * z)
        return w * inv_qn, x * inv_qn, y * inv_qn, z * inv_qn

    def rot_elems(q):
        w, x, y, z = q
        w2, x2, y2, z2 = w * w, x * x, y * y, z * z
        wx, wy, wz = w * x, w * y, w * z
        xy, xz, yz = x * y, x * z, y * z
        two = jnp.float32(2.0)
        return (w2 + x2 - y2 - z2, two * (xy - wz), two * (wy + xz),
                two * (wz + xy), w2 - x2 + y2 - z2, two * (yz - wx),
                two * (xz - wy), two * (wx + yz), w2 - x2 - y2 + z2)

    rp = rot_elems(quat(pa_ref))
    rg = rot_elems(quat(ga_ref))

    # Fused elementwise accumulation over the 9 rotmat entries (no XLU reduces).
    d2 = None
    for a, b in zip(rp, rg):
        d = a - b
        d2 = d * d if d2 is None else d2 + d * d

    acc_ref[...] += d2


def smpl_loss_pallas(theta, gt_pose, gt_shape, *,
                     e_pose_loss_weight, e_shape_loss_weight,
                     rows_per_block=512):
    """Pallas implementation of SMPLloss.forward."""
    B, T, C = theta.shape
    assert C == 85, "theta is expected to be (B, T, 85): 3 cam + 72 pose + 10 shape"
    N = B * T
    M = N * 24                                    # number of axis-angle vectors

    pred_pose = theta[:, :, 3:75].reshape(N, 72)
    pred_shape = theta[:, :, 75:].reshape(N, 10)
    real_pose = gt_pose.reshape(N, 72)
    real_shape = gt_shape.reshape(N, 10)

    # ---- pose term: dense (3, Rpad, 128) packing + tiled reduction grid ----
    r_needed = -(-M // 128)                       # 128-lane rows needed
    r8 = _round_up(r_needed, 8)
    rows_blk = _round_up(min(int(rows_per_block), r8), 8)
    nblocks = -(-r8 // rows_blk)
    ncs = 2 if nblocks >= 2 else 1                # split reduction over (up to) 2 TCs
    nr = -(-nblocks // ncs)
    rpad = ncs * nr * rows_blk                    # total padded rows (zeros)

    def pack(pose_2d):
        comps = pose_2d.reshape(M, 3).astype(jnp.float32).T      # (3, M) de-interleave
        comps = jnp.pad(comps, ((0, 0), (0, rpad * 128 - M)))    # symmetric zero pad
        return comps.reshape(3, rpad, 128)

    pa = pack(pred_pose)
    ga = pack(real_pose)

    in_spec = pl.BlockSpec((3, rows_blk, 128), lambda c, r: (0, c * nr + r, 0))
    out_spec = pl.BlockSpec((rows_blk, 128), lambda c, r: (c, 0))

    partial = pl.pallas_call(
        _pose_sse_kernel,
        out_shape=jax.ShapeDtypeStruct((ncs * rows_blk, 128), jnp.float32),
        grid_spec=pltpu.PrefetchScalarGridSpec(
            num_scalar_prefetch=0,
            grid=(ncs, nr),
            in_specs=[in_spec, in_spec],
            out_specs=out_spec,
        ),
        compiler_params=pltpu.CompilerParams(
            dimension_semantics=("parallel", "arbitrary")),
    )(pa, ga)

    loss_pose = jnp.sum(partial) / jnp.float32(M * 9)     # MSE over (N, 24, 3, 3)

    # ---- shape (betas) term: tiny (N x 10); computed in the wrapper per review ----
    sd = pred_shape.astype(jnp.float32) - real_shape.astype(jnp.float32)
    loss_shape = jnp.sum(sd * sd) / jnp.float32(N * 10)

    return (loss_shape * jnp.float32(e_shape_loss_weight)
            + loss_pose * jnp.float32(e_pose_loss_weight))


def _smpl_loss_ref(theta, gt_pose, gt_shape, *, e_pose_loss_weight, e_shape_loss_weight):
    """Pure-JAX reference (mirrors the PyTorch module)."""
    B, T, _ = theta.shape
    N = B * T

    def batch_rodrigues(aa):                                     # (K, 3)
        angle = jnp.linalg.norm(aa + 1e-8, axis=1, keepdims=True)
        normalized = aa / angle
        half = angle * 0.5
        w = jnp.cos(half)
        xyz = jnp.sin(half) * normalized
        quat = jnp.concatenate([w, xyz], axis=1)
        quat = quat / jnp.linalg.norm(quat, axis=1, keepdims=True)
        w, x, y, z = quat[:, 0], quat[:, 1], quat[:, 2], quat[:, 3]
        w2, x2, y2, z2 = w * w, x * x, y * y, z * z
        wx, wy, wz = w * x, w * y, w * z
        xy, xz, yz = x * y, x * z, y * z
        R = jnp.stack([w2 + x2 - y2 - z2, 2 * xy - 2 * wz, 2 * wy + 2 * xz,
                       2 * wz + 2 * xy, w2 - x2 + y2 - z2, 2 * yz - 2 * wx,
                       2 * xz - 2 * wy, 2 * wx + 2 * yz, w2 - x2 - y2 + z2], axis=1)
        return R.reshape(-1, 3, 3)

    pred_pose = theta[:, :, 3:75].reshape(N, 72)
    pred_shape = theta[:, :, 75:].reshape(N, 10)
    real_pose = gt_pose.reshape(N, 72)
    real_shape = gt_shape.reshape(N, 10)

    Rp = batch_rodrigues(pred_pose.reshape(-1, 3))
    Rg = batch_rodrigues(real_pose.reshape(-1, 3))
    loss_pose = jnp.mean((Rp - Rg) ** 2)
    loss_shape = jnp.mean((pred_shape - real_shape) ** 2)
    return loss_shape * e_shape_loss_weight + loss_pose * e_pose_loss_weight


if __name__ == "__main__":
    key = jax.random.PRNGKey(0)
    B, T = 2, 8                                   # batch=2, seq=8 -> N=16, M=384
    k1, k2, k3 = jax.random.split(key, 3)
    theta = jax.random.normal(k1, (B, T, 85), dtype=jnp.float32) * 0.5
    gt_pose = jax.random.normal(k2, (B, T, 72), dtype=jnp.float32) * 0.5
    gt_shape = jax.random.normal(k3, (B, T, 10), dtype=jnp.float32)

    w_pose, w_shape = 60.0, 0.06                  # e_pose_loss_weight, e_shape_loss_weight

    loss = smpl_loss_pallas(theta, gt_pose, gt_shape,
                            e_pose_loss_weight=w_pose, e_shape_loss_weight=w_shape)
    jax.block_until_ready(loss)

    ref = _smpl_loss_ref(theta, gt_pose, gt_shape,
                         e_pose_loss_weight=w_pose, e_shape_loss_weight=w_shape)
    np.testing.assert_allclose(np.asarray(loss), np.asarray(ref), rtol=2e-3, atol=2e-4)

    print("KERNEL_OK")
</pallas_src>

<mosaic_0001>
module attributes {stable_mosaic.version = 11 : i64} {
  func.func @_pose_sse_kernel(%arg0: i32, %arg1: i32, %arg2: memref<3x8x128xf32, #tpu.memory_space<vmem>>, %arg3: memref<3x8x128xf32, #tpu.memory_space<vmem>>, %arg4: memref<8x128xf32, #tpu.memory_space<vmem>>) attributes {dimension_semantics = [#tpu.dimension_semantics<parallel>, #tpu.dimension_semantics<arbitrary>], iteration_bounds = array<i64: 1, 1>, scalar_prefetch = 0 : i64, scratch_operands = 0 : i64, tpu.core_type = #tpu.core_type<tc>, window_params = [{transform_indices = @transform_0, window_bounds = array<i64: 3, 8, 128>}, {transform_indices = @transform_1, window_bounds = array<i64: 3, 8, 128>}, {transform_indices = @transform_2, window_bounds = array<i64: 8, 128>}]} {
    %c0_i32 = arith.constant 0 : i32
    %0 = arith.cmpi eq, %arg1, %c0_i32 : i32
    %1 = arith.extui %0 : i1 to i32
    %c0_i32_0 = arith.constant 0 : i32
    %2 = arith.cmpi ne, %1, %c0_i32_0 : i32
    scf.if %2 {
      %cst_39 = arith.constant 0.000000e+00 : f32
      %188 = vector.broadcast %cst_39 : f32 to vector<8x128xf32>
      %c0_40 = arith.constant 0 : index
      %c0_41 = arith.constant 0 : index
      %189 = vector.load %arg4[%c0_40, %c0_41] : memref<8x128xf32, #tpu.memory_space<vmem>>, vector<8x128xf32>
      tpu.vector_store %arg4[%c0_40, %c0_41], %188 {strides = array<i32>} : memref<8x128xf32, #tpu.memory_space<vmem>>, vector<8x128xf32>,
    } else {
    }
    %c0 = arith.constant 0 : index
    %c0_1 = arith.constant 0 : index
    %c0_2 = arith.constant 0 : index
    %3 = vector.load %arg2[%c0, %c0_1, %c0_2] : memref<3x8x128xf32, #tpu.memory_space<vmem>>, vector<1x8x128xf32>
    %4 = vector.shape_cast %3 : vector<1x8x128xf32> to vector<8x128xf32>
    %c1 = arith.constant 1 : index
    %c0_3 = arith.constant 0 : index
    %c0_4 = arith.constant 0 : index
    %5 = vector.load %arg2[%c1, %c0_3, %c0_4] : memref<3x8x128xf32, #tpu.memory_space<vmem>>, vector<1x8x128xf32>
    %6 = vector.shape_cast %5 : vector<1x8x128xf32> to vector<8x128xf32>
    %c2 = arith.constant 2 : index
    %c0_5 = arith.constant 0 : index
    %c0_6 = arith.constant 0 : index
    %7 = vector.load %arg2[%c2, %c0_5, %c0_6] : memref<3x8x128xf32, #tpu.memory_space<vmem>>, vector<1x8x128xf32>
    %8 = vector.shape_cast %7 : vector<1x8x128xf32> to vector<8x128xf32>
    %cst = arith.constant 9.99999993E-9 : f32
    %9 = vector.broadcast %cst : f32 to vector<8x128xf32>
    %10 = arith.addf %4, %9 : vector<8x128xf32>
    %cst_7 = arith.constant 9.99999993E-9 : f32
    %11 = vector.broadcast %cst_7 : f32 to vector<8x128xf32>
    %12 = arith.addf %6, %11 : vector<8x128xf32>
    %cst_8 = arith.constant 9.99999993E-9 : f32
    %13 = vector.broadcast %cst_8 : f32 to vector<8x128xf32>
    %14 = arith.addf %8, %13 : vector<8x128xf32>
    %15 = arith.mulf %10, %10 : vector<8x128xf32>
    %16 = arith.mulf %12, %12 : vector<8x128xf32>
    %17 = arith.addf %15, %16 : vector<8x128xf32>
    %18 = arith.mulf %14, %14 : vector<8x128xf32>
    %19 = arith.addf %17, %18 : vector<8x128xf32>
    %20 = math.rsqrt %19 : vector<8x128xf32>
    %21 = arith.mulf %19, %20 : vector<8x128xf32>
    %cst_9 = arith.constant 5.000000e-01 : f32
    %22 = vector.broadcast %cst_9 : f32 to vector<8x128xf32>
    %23 = arith.mulf %21, %22 : vector<8x128xf32>
    %24 = math.cos %23 : vector<8x128xf32>
    %25 = math.sin %23 : vector<8x128xf32>
    %26 = arith.mulf %4, %20 : vector<8x128xf32>
    %27 = arith.mulf %25, %26 : vector<8x128xf32>
    %28 = arith.mulf %6, %20 : vector<8x128xf32>
    %29 = arith.mulf %25, %28 : vector<8x128xf32>
    %30 = arith.mulf %8, %20 : vector<8x128xf32>
    %31 = arith.mulf %25, %30 : vector<8x128xf32>
    %32 = arith.mulf %24, %24 : vector<8x128xf32>
    %33 = arith.mulf %27, %27 : vector<8x128xf32>
    %34 = arith.addf %32, %33 : vector<8x128xf32>
    %35 = arith.mulf %29, %29 : vector<8x128xf32>
    %36 = arith.addf %34, %35 : vector<8x128xf32>
    %37 = arith.mulf %31, %31 : vector<8x128xf32>
    %38 = arith.addf %36, %37 : vector<8x128xf32>
    %39 = math.rsqrt %38 : vector<8x128xf32>
    %40 = arith.mulf %24, %39 : vector<8x128xf32>
    %41 = arith.mulf %27, %39 : vector<8x128xf32>
    %42 = arith.mulf %29, %39 : vector<8x128xf32>
    %43 = arith.mulf %31, %39 : vector<8x128xf32>
    %44 = arith.mulf %40, %40 : vector<8x128xf32>
    %45 = arith.mulf %41, %41 : vector<8x128xf32>
    %46 = arith.mulf %42, %42 : vector<8x128xf32>
    %47 = arith.mulf %43, %43 : vector<8x128xf32>
    %48 = arith.mulf %40, %41 : vector<8x128xf32>
    %49 = arith.mulf %40, %42 : vector<8x128xf32>
    %50 = arith.mulf %40, %43 : vector<8x128xf32>
    %51 = arith.mulf %41, %42 : vector<8x128xf32>
    %52 = arith.mulf %41, %43 : vector<8x128xf32>
    %53 = arith.mulf %42, %43 : vector<8x128xf32>
    %54 = arith.addf %44, %45 : vector<8x128xf32>
    %55 = arith.subf %54, %46 : vector<8x128xf32>
    %56 = arith.subf %55, %47 : vector<8x128xf32>
    %57 = arith.subf %51, %50 : vector<8x128xf32>
    %cst_10 = arith.constant 2.000000e+00 : f32
    %58 = vector.broadcast %cst_10 : f32 to vector<8x128xf32>
    %59 = arith.mulf %58, %57 : vector<8x128xf32>
    %60 = arith.addf %49, %52 : vector<8x128xf32>
    %cst_11 = arith.constant 2.000000e+00 : f32
    %61 = vector.broadcast %cst_11 : f32 to vector<8x128xf32>
    %62 = arith.mulf %61, %60 : vector<8x128xf32>
    %63 = arith.addf %50, %51 : vector<8x128xf32>
    %cst_12 = arith.constant 2.000000e+00 : f32
    %64 = vector.broadcast %cst_12 : f32 to vector<8x128xf32>
    %65 = arith.mulf %64, %63 : vector<8x128xf32>
    %66 = arith.subf %44, %45 : vector<8x128xf32>
    %67 = arith.addf %66, %46 : vector<8x128xf32>
    %68 = arith.subf %67, %47 : vector<8x128xf32>
    %69 = arith.subf %53, %48 : vector<8x128xf32>
    %cst_13 = arith.constant 2.000000e+00 : f32
    %70 = vector.broadcast %cst_13 : f32 to vector<8x128xf32>
    %71 = arith.mulf %70, %69 : vector<8x128xf32>
    %72 = arith.subf %52, %49 : vector<8x128xf32>
    %cst_14 = arith.constant 2.000000e+00 : f32
    %73 = vector.broadcast %cst_14 : f32 to vector<8x128xf32>
    %74 = arith.mulf %73, %72 : vector<8x128xf32>
    %75 = arith.addf %48, %53 : vector<8x128xf32>
    %cst_15 = arith.constant 2.000000e+00 : f32
    %76 = vector.broadcast %cst_15 : f32 to vector<8x128xf32>
    %77 = arith.mulf %76, %75 : vector<8x128xf32>
    %78 = arith.subf %44, %45 : vector<8x128xf32>
    %79 = arith.subf %78, %46 : vector<8x128xf32>
    %80 = arith.addf %79, %47 : vector<8x128xf32>
    %c0_16 = arith.constant 0 : index
    %c0_17 = arith.constant 0 : index
    %c0_18 = arith.constant 0 : index
    %81 = vector.load %arg3[%c0_16, %c0_17, %c0_18] : memref<3x8x128xf32, #tpu.memory_space<vmem>>, vector<1x8x128xf32>
    %82 = vector.shape_cast %81 : vector<1x8x128xf32> to vector<8x128xf32>
    %c1_19 = arith.constant 1 : index
    %c0_20 = arith.constant 0 : index
    %c0_21 = arith.constant 0 : index
    %83 = vector.load %arg3[%c1_19, %c0_20, %c0_21] : memref<3x8x128xf32, #tpu.memory_space<vmem>>, vector<1x8x128xf32>
    %84 = vector.shape_cast %83 : vector<1x8x128xf32> to vector<8x128xf32>
    %c2_22 = arith.constant 2 : index
    %c0_23 = arith.constant 0 : index
    %c0_24 = arith.constant 0 : index
    %85 = vector.load %arg3[%c2_22, %c0_23, %c0_24] : memref<3x8x128xf32, #tpu.memory_space<vmem>>, vector<1x8x128xf32>
    %86 = vector.shape_cast %85 : vector<1x8x128xf32> to vector<8x128xf32>
    %cst_25 = arith.constant 9.99999993E-9 : f32
    %87 = vector.broadcast %cst_25 : f32 to vector<8x128xf32>
    %88 = arith.addf %82, %87 : vector<8x128xf32>
    %cst_26 = arith.constant 9.99999993E-9 : f32
    %89 = vector.broadcast %cst_26 : f32 to vector<8x128xf32>
    %90 = arith.addf %84, %89 : vector<8x128xf32>
    %cst_27 = arith.constant 9.99999993E-9 : f32
    %91 = vector.broadcast %cst_27 : f32 to vector<8x128xf32>
    %92 = arith.addf %86, %91 : vector<8x128xf32>
    %93 = arith.mulf %88, %88 : vector<8x128xf32>
    %94 = arith.mulf %90, %90 : vector<8x128xf32>
    %95 = arith.addf %93, %94 : vector<8x128xf32>
    %96 = arith.mulf %92, %92 : vector<8x128xf32>
    %97 = arith.addf %95, %96 : vector<8x128xf32>
    %98 = math.rsqrt %97 : vector<8x128xf32>
    %99 = arith.mulf %97, %98 : vector<8x128xf32>
    %cst_28 = arith.constant 5.000000e-01 : f32
    %100 = vector.broadcast %cst_28 : f32 to vector<8x128xf32>
    %101 = arith.mulf %99, %100 : vector<8x128xf32>
    %102 = math.cos %101 : vector<8x128xf32>
    %103 = math.sin %101 : vector<8x128xf32>
    %104 = arith.mulf %82, %98 : vector<8x128xf32>
    %105 = arith.mulf %103, %104 : vector<8x128xf32>
    %106 = arith.mulf %84, %98 : vector<8x128xf32>
    %107 = arith.mulf %103, %106 : vector<8x128xf32>
    %108 = arith.mulf %86, %98 : vector<8x128xf32>
    %109 = arith.mulf %103, %108 : vector<8x128xf32>
    %110 = arith.mulf %102, %102 : vector<8x128xf32>
    %111 = arith.mulf %105, %105 : vector<8x128xf32>
    %112 = arith.addf %110, %111 : vector<8x128xf32>
    %113 = arith.mulf %107, %107 : vector<8x128xf32>
    %114 = arith.addf %112, %113 : vector<8x128xf32>
    %115 = arith.mulf %109, %109 : vector<8x128xf32>
    %116 = arith.addf %114, %115 : vector<8x128xf32>
    %117 = math.rsqrt %116 : vector<8x128xf32>
    %118 = arith.mulf %102, %117 : vector<8x128xf32>
    %119 = arith.mulf %105, %117 : vector<8x128xf32>
    %120 = arith.mulf %107, %117 : vector<8x128xf32>
    %121 = arith.mulf %109, %117 : vector<8x128xf32>
    %122 = arith.mulf %118, %118 : vector<8x128xf32>
    %123 = arith.mulf %119, %119 : vector<8x128xf32>
    %124 = arith.mulf %120, %120 : vector<8x128xf32>
    %125 = arith.mulf %121, %121 : vector<8x128xf32>
    %126 = arith.mulf %118, %119 : vector<8x128xf32>
    %127 = arith.mulf %118, %120 : vector<8x128xf32>
    %128 = arith.mulf %118, %121 : vector<8x128xf32>
    %129 = arith.mulf %119, %120 : vector<8x128xf32>
    %130 = arith.mulf %119, %121 : vector<8x128xf32>
    %131 = arith.mulf %120, %121 : vector<8x128xf32>
    %132 = arith.addf %122, %123 : vector<8x128xf32>
    %133 = arith.subf %132, %124 : vector<8x128xf32>
    %134 = arith.subf %133, %125 : vector<8x128xf32>
    %135 = arith.subf %129, %128 : vector<8x128xf32>
    %cst_29 = arith.constant 2.000000e+00 : f32
    %136 = vector.broadcast %cst_29 : f32 to vector<8x128xf32>
    %137 = arith.mulf %136, %135 : vector<8x128xf32>
    %138 = arith.addf %127, %130 : vector<8x128xf32>
    %cst_30 = arith.constant 2.000000e+00 : f32
    %139 = vector.broadcast %cst_30 : f32 to vector<8x128xf32>
    %140 = arith.mulf %139, %138 : vector<8x128xf32>
    %141 = arith.addf %128, %129 : vector<8x128xf32>
    %cst_31 = arith.constant 2.000000e+00 : f32
    %142 = vector.broadcast %cst_31 : f32 to vector<8x128xf32>
    %143 = arith.mulf %142, %141 : vector<8x128xf32>
    %144 = arith.subf %122, %123 : vector<8x128xf32>
    %145 = arith.addf %144, %124 : vector<8x128xf32>
    %146 = arith.subf %145, %125 : vector<8x128xf32>
    %147 = arith.subf %131, %126 : vector<8x128xf32>
    %cst_32 = arith.constant 2.000000e+00 : f32
    %148 = vector.broadcast %cst_32 : f32 to vector<8x128xf32>
    %149 = arith.mulf %148, %147 : vector<8x128xf32>
    %150 = arith.subf %130, %127 : vector<8x128xf32>
    %cst_33 = arith.constant 2.000000e+00 : f32
    %151 = vector.broadcast %cst_33 : f32 to vector<8x128xf32>
    %152 = arith.mulf %151, %150 : vector<8x128xf32>
    %153 = arith.addf %126, %131 : vector<8x128xf32>
    %cst_34 = arith.constant 2.000000e+00 : f32
    %154 = vector.broadcast %cst_34 : f32 to vector<8x128xf32>
    %155 = arith.mulf %154, %153 : vector<8x128xf32>
    %156 = arith.subf %122, %123 : vector<8x128xf32>
    %157 = arith.subf %156, %124 : vector<8x128xf32>
    %158 = arith.addf %157, %125 : vector<8x128xf32>
    %159 = arith.subf %56, %134 : vector<8x128xf32>
    %160 = arith.mulf %159, %159 : vector<8x128xf32>
    %161 = arith.subf %59, %137 : vector<8x128xf32>
    %162 = arith.mulf %161, %161 : vector<8x128xf32>
    %163 = arith.addf %160, %162 : vector<8x128xf32>
    %164 = arith.subf %62, %140 : vector<8x128xf32>
    %165 = arith.mulf %164, %164 : vector<8x128xf32>
    %166 = arith.addf %163, %165 : vector<8x128xf32>
    %167 = arith.subf %65, %143 : vector<8x128xf32>
    %168 = arith.mulf %167, %167 : vector<8x128xf32>
    %169 = arith.addf %166, %168 : vector<8x128xf32>
    %170 = arith.subf %68, %146 : vector<8x128xf32>
    %171 = arith.mulf %170, %170 : vector<8x128xf32>
    %172 = arith.addf %169, %171 : vector<8x128xf32>
    %173 = arith.subf %71, %149 : vector<8x128xf32>
    %174 = arith.mulf %173, %173 : vector<8x128xf32>
    %175 = arith.addf %172, %174 : vector<8x128xf32>
    %176 = arith.subf %74, %152 : vector<8x128xf32>
    %177 = arith.mulf %176, %176 : vector<8x128xf32>
    %178 = arith.addf %175, %177 : vector<8x128xf32>
    %179 = arith.subf %77, %155 : vector<8x128xf32>
    %180 = arith.mulf %179, %179 : vector<8x128xf32>
    %181 = arith.addf %178, %180 : vector<8x128xf32>
    %182 = arith.subf %80, %158 : vector<8x128xf32>
    %183 = arith.mulf %182, %182 : vector<8x128xf32>
    %184 = arith.addf %181, %183 : vector<8x128xf32>
    %c0_35 = arith.constant 0 : index
    %c0_36 = arith.constant 0 : index
    %185 = vector.load %arg4[%c0_35, %c0_36] : memref<8x128xf32, #tpu.memory_space<vmem>>, vector<8x128xf32>
    %186 = arith.addf %185, %184 : vector<8x128xf32>
    %c0_37 = arith.constant 0 : index
    %c0_38 = arith.constant 0 : index
    %187 = vector.load %arg4[%c0_37, %c0_38] : memref<8x128xf32, #tpu.memory_space<vmem>>, vector<8x128xf32>
    tpu.vector_store %arg4[%c0_37, %c0_38], %186 {strides = array<i32>} : memref<8x128xf32, #tpu.memory_space<vmem>>, vector<8x128xf32>,
    return
  }
  func.func @transform_0(%arg0: i32, %arg1: i32) -> (i32, i32, i32) {
    %c1_i32 = arith.constant 1 : i32
    %0 = arith.muli %arg0, %c1_i32 : i32
    %1 = arith.addi %0, %arg1 : i32
    %c0_i32 = arith.constant 0 : i32
    %c0_i32_0 = arith.constant 0 : i32
    %c0_i32_1 = arith.constant 0 : i32
    return %c0_i32, %1, %c0_i32_0 : i32, i32, i32
  }
  func.func @transform_1(%arg0: i32, %arg1: i32) -> (i32, i32, i32) {
    %c1_i32 = arith.constant 1 : i32
    %0 = arith.muli %arg0, %c1_i32 : i32
    %1 = arith.addi %0, %arg1 : i32
    %c0_i32 = arith.constant 0 : i32
    %c0_i32_0 = arith.constant 0 : i32
    %c0_i32_1 = arith.constant 0 : i32
    return %c0_i32, %1, %c0_i32_0 : i32, i32, i32
  }
  func.func @transform_2(%arg0: i32, %arg1: i32) -> (i32, i32) {
    %c0_i32 = arith.constant 0 : i32
    %c0_i32_0 = arith.constant 0 : i32
    return %arg0, %c0_i32 : i32, i32
  }
}

</mosaic_0001>

<llo_original>
// kernel: tpu_custom_call.1
$region0: #{tpu_custom_call.1}
  #allocation0 [shape = 'u32[]', space=smem, size = 0x4, offset = 0x4, fixed_abs, tag = 'smem constant byte address 0x4 - core index']
  #allocation1 [shape = 'u32[144,128]{1,0:T(1,128)}', space=vmem, size = 0x12000, scoped, tag = 'internal scratch']
  %s0 = inlined_call_operand.hbm [shape: f32[3,8,128], index: 0, kind: input, shape index: {}]
  %s1 = inlined_call_operand.hbm [shape: f32[3,8,128], index: 1, kind: input, shape index: {}]
  %s2 = inlined_call_operand.hbm [shape: f32[8,128], index: 2, kind: output, shape index: {}]
  %s3 = sld [smem:[#allocation0]]
  $region30: #{tpu_custom_call.1} parent=0
    _
  %s5 = ssub.s32 1, %s3
  %s6 = scalar_select 0, %s5, %s3
  $region1: #{tpu_custom_call.1} parent=0
    #allocation2 [shape = 'u8[12288]{0}', space=vmem, size = 0x3000, scoped, tag = 'input window, operand 0, single buffered']
    #allocation3 [shape = 's32[1]{0}', space=sflag, size = 0x4, scoped, tag = 'scoped memory for tpu_custom_call.1']
    #allocation4 [shape = 's32[1]{0}', space=sflag, size = 0x4, scoped, tag = 'scoped memory for tpu_custom_call.1']
    #allocation5 [shape = 'u8[12288]{0}', space=vmem, size = 0x3000, scoped, tag = 'input window, operand 1, single buffered']
    #allocation6 [shape = 's32[1]{0}', space=sflag, size = 0x4, scoped, tag = 'scoped memory for tpu_custom_call.1']
    #allocation7 [shape = 'u8[4096]{0}', space=vmem, size = 0x1000, scoped, tag = 'output window, operand 0, single buffered']
    %7 = vsyncpa [#allocation3], 0
    %8 = vsyncpa [#allocation6], 0
    %9 = vsyncpa [#allocation4], 0
    // Predicated region
    $region2: #{tpu_custom_call.1} parent=1 // pred_check
      _
    $region3: #{tpu_custom_call.1} parent=1 // pred_check_branch
      %11 = sbr.rel (0) target = $region5
    $region4: #{tpu_custom_call.1} parent=1 // pred_region
      %s12 = sadd.s32 0, 0
      %s14 = ssub.s32 384, 384
      %15 = vsyncadd [#allocation3], %s14
      %s16 = smul.addr %s12, 128
      %s17 = scalar_lea.hbm %s0, %s16
      %s18 = sshll.u32 [#allocation2], 4
      %s19 = int_to_ptr.vmem [resolvable:$true] %s18
      %24 = dma.hbm_to_vmem [thread:$0]  %s17, 384, %s19, [#allocation3], 128, 128, 8
    $region5: #{tpu_custom_call.1} parent=1 // pred_fallthru
      _
    // Predicated region
    $region6: #{tpu_custom_call.1} parent=1 // pred_check
      _
    $region7: #{tpu_custom_call.1} parent=1 // pred_check_branch
      %26 = sbr.rel (0) target = $region9
    $region8: #{tpu_custom_call.1} parent=1 // pred_region
      %s27 = sadd.s32 0, 0
      %s29 = ssub.s32 384, 384
      %30 = vsyncadd [#allocation6], %s29
      %s31 = smul.addr %s27, 128
      %s32 = scalar_lea.hbm %s1, %s31
      %s33 = sshll.u32 [#allocation5], 4
      %s34 = int_to_ptr.vmem [resolvable:$true] %s33
      %39 = dma.hbm_to_vmem [thread:$0]  %s32, 384, %s34, [#allocation6], 128, 128, 8
    $region9: #{tpu_custom_call.1} parent=1 // pred_fallthru
      _
    // Predicated region
    $region10: #{tpu_custom_call.1} parent=1 // pred_check
      _
    $region11: #{tpu_custom_call.1} parent=1 // pred_check_branch
      %41 = sbr.rel (0) target = $region13
    $region12: #{tpu_custom_call.1} parent=1 // pred_region
      %42 = dma.done [#allocation3], 384
    $region13: #{tpu_custom_call.1} parent=1 // pred_fallthru
      _
    // Predicated region
    $region14: #{tpu_custom_call.1} parent=1 // pred_check
      _
    $region15: #{tpu_custom_call.1} parent=1 // pred_check_branch
      %44 = sbr.rel (0) target = $region17
    $region16: #{tpu_custom_call.1} parent=1 // pred_region
      %45 = dma.done [#allocation6], 384
    $region17: #{tpu_custom_call.1} parent=1 // pred_fallthru
      _
    %s46 = sadd.s32 0, 0
    %s47 = sadd.s32 0, 0
    %p48 = scmp.eq.s32.totalorder 0, 0
    // Predicated region
    $region18: #{tpu_custom_call.1} parent=1 // pred_check
      %p49 = pneg %p48
    $region19: #{tpu_custom_call.1} parent=1 // pred_check_branch
      %51 = sbr.rel (%p49) target = $region21
    $region20: #{tpu_custom_call.1} parent=1 // pred_region
      %52 = vst [vmem:[#allocation7] sm:$0xff] 0.0
    $region21: #{tpu_custom_call.1} parent=1 // pred_fallthru
      _
    %v53 = vld [vmem:[#allocation2] sm:$0xff]
    %s54 = scalar_lea.vmem [#allocation2], 8
    %v55 = vld [vmem:[%s54] sm:$0xff]
    %s56 = scalar_lea.vmem [#allocation2], 16
    %v57 = vld [vmem:[%s56] sm:$0xff]
    %v58 = vadd.f32 %v53, 1e-08
    %v59 = vadd.f32 %v55, 1e-08
    %v60 = vadd.f32 %v57, 1e-08
    %v61 = vmul.f32 %v58, %v58
    %v62 = vmul.f32 %v59, %v59
    %v63 = vadd.f32 %v61, %v62
    %v64 = vmul.f32 %v60, %v60
    %v65 = vadd.f32 %v63, %v64
    %v66 = vrsqrt.pop %v65
    %v67 = vmul.f32 %v65, %v66
    %v68 = vmul.f32 %v67, 0.5
    %v69 = vand.u32 2147483647, %v68
    %vm70 = vcmp.le.f32.partialorder %v69, 0.7853982
    %vm71 = vcmp.lt.s32.totalorder %v68, 0
    %v72 = vand.u32 %v68, 2139095040
    %v73 = vshrl.u32 %v72, 23
    %v74 = vsub.s32 %v73, 127
    %v75 = vand.u32 2147483647, %v68
    %v76 = vand.u32 %v75, 8388607
    %v77 = vor.u32 %v76, 8388608
    %v78 = vsub.s32 0, %v77
    %v79 = vadd.s32 %v74, 1
    %vm80 = vcmp.gt.s32.totalorder %v79, 0
    %v81 = vsel %vm80, %v79, 0
    %v82 = vshrl.u32 %v81, 5
    %v83 = vand.u32 %v81, 31
    %v84 = vsub.s32 32, %v83
    %v85 = vshrl.u32 683565275, %v84
    %v86 = vshll.u32 683565275, %v83
    %v87 = vshrl.u32 2475754826, %v84
    %v88 = vor.u32 %v86, %v87
    %v89 = vshll.u32 2475754826, %v83
    %v90 = vshrl.u32 2131351028, %v84
    %v91 = vor.u32 %v89, %v90
    %v92 = vshll.u32 2131351028, %v83
    %v93 = vshrl.u32 2102212464, %v84
    %v94 = vor.u32 %v92, %v93
    %v95 = vshll.u32 2102212464, %v83
    %v96 = vshrl.u32 920167782, %v84
    %v97 = vor.u32 %v95, %v96
    %v98 = vshll.u32 920167782, %v83
    %v99 = vshrl.u32 1326507024, %v84
    %v100 = vor.u32 %v98, %v99
    %vm101 = vcmp.lt.s32.totalorder %v82, 1
    %vm102 = vcmp.lt.s32.totalorder %v82, 2
    %vm103 = vcmp.lt.s32.totalorder %v82, 3
    %vm104 = vcmp.lt.s32.totalorder %v82, 4
    %v105 = vsel %vm101, %v85, %v88
    %v106 = vsel %vm104, %v94, 2102212464
    %v107 = vsel %vm103, %v91, %v106
    %v108 = vsel %vm102, %v105, %v107
    %v109 = vsel %vm101, %v88, %v91
    %v110 = vsel %vm104, %v97, 920167782
    %v111 = vsel %vm103, %v94, %v110
    %v112 = vsel %vm102, %v109, %v111
    %v113 = vsel %vm101, %v91, %v94
    %v114 = vsel %vm104, %v100, 1326507024
    %v115 = vsel %vm103, %v97, %v114
    %v116 = vsel %vm102, %v113, %v115
    %v117 = vshll.u32 %v77, 8
    %v118 = vmul.u32.u64.compose %v117, %v116
    %v119 = vextract.low.u32 %v118
    %v120 = vextract.high.u32 %v118
    %v121 = vmul.u32.u64.compose %v117, %v112
    %v122 = vextract.low.u32 %v121
    %v123 = vextract.high.u32 %v121
    %v124 = vmul.u32 %v117, %v108
    %v125 = vadd.s32 %v120, %v122
    %vm126 = vc.u32 %v120, %v122
    %v127 = vadd.s32 %v123, 1
    %v128 = vsel %vm126, %v127, %v123
    %v129 = vadd.s32 %v124, %v128
    %v130 = vadd.s32 %v129, 536870912
    %v131 = vshrl.u32 %v130, 30
    %v132 = vshll.u32 %v131, 30
    %v133 = vsub.s32 %v129, %v132
    %vm134 = vcmp.lt.s32.totalorder %v133, 0
    %v135 = vsub.s32 0, %v133
    %v136 = vsel %vm134, %v135, %v133
    %v137 = vclz %v136
    %v138 = vsub.s32 %v137, 2
    %vm139 = vcmp.gt.s32.totalorder 0, %v138
    %v140 = vsel %vm139, 0, %v138
    %v141 = vsub.s32 32, %v140
    %v142 = vshll.u32 %v133, %v140
    %v143 = vshrl.u32 %v125, %v141
    %v144 = vor.u32 %v142, %v143
    %v145 = vsub.s32 4294967266, %v140
    %v146 = vadd.s32 %v145, 127
    %v147 = vshll.u32 %v146, 23
    %v148 = vor.u32 4788187, %v147
    %v149 = vand.u32 2147483647, %v148
    %v151 = vcvt.s32.f32 %v144
    %v152 = vmul.f32 %v151, %v149
    %v153 = vxor.u32 %v152, 2147483648
    %v154 = vsel %vm71, %v153, %v152
    %v155 = vsub.s32 4, %v131
    %v156 = vsel %vm71, %v155, %v131
    %v157 = vsel %vm70, %v68, %v154
    %v158 = vsel %vm70, 0, %v156
    %v159 = vcosq.f32.pop %v157
    %v160 = vsinq.f32.pop %v157
    %vm161 = vweird.f32 %v68
    %v162 = vand.u32 %v158, 3
    %vm163 = vcmp.lt.s32.totalorder %v162, 2
    %vm164 = vcmp.eq.s32.totalorder %v162, 0
    %v165 = vxor.u32 %v160, 2147483648
    %v166 = vsel %vm164, %v159, %v165
    %vm167 = vcmp.eq.s32.totalorder %v162, 2
    %v168 = vxor.u32 %v159, 2147483648
    %v169 = vsel %vm167, %v168, %v160
    %v170 = vsel %vm163, %v166, %v169
    %v171 = vsel %vm161, nan, %v170
    %v172 = vand.u32 2147483647, %v68
    %vm173 = vcmp.le.f32.partialorder %v172, 0.7853982
    %vm174 = vcmp.lt.s32.totalorder %v68, 0
    %v175 = vand.u32 %v68, 2139095040
    %v176 = vshrl.u32 %v175, 23
    %v177 = vsub.s32 %v176, 127
    %v178 = vand.u32 2147483647, %v68
    %v179 = vand.u32 %v178, 8388607
    %v180 = vor.u32 %v179, 8388608
    %v181 = vsub.s32 0, %v180
    %v182 = vadd.s32 %v177, 1
    %vm183 = vcmp.gt.s32.totalorder %v182, 0
    %v184 = vsel %vm183, %v182, 0
    %v185 = vshrl.u32 %v184, 5
    %v186 = vand.u32 %v184, 31
    %v187 = vsub.s32 32, %v186
    %v188 = vshrl.u32 683565275, %v187
    %v189 = vshll.u32 683565275, %v186
    %v190 = vshrl.u32 2475754826, %v187
    %v191 = vor.u32 %v189, %v190
    %v192 = vshll.u32 2475754826, %v186
    %v193 = vshrl.u32 2131351028, %v187
    %v194 = vor.u32 %v192, %v193
    %v195 = vshll.u32 2131351028, %v186
    %v196 = vshrl.u32 2102212464, %v187
    %v197 = vor.u32 %v195, %v196
    %v198 = vshll.u32 2102212464, %v186
    %v199 = vshrl.u32 920167782, %v187
    %v200 = vor.u32 %v198, %v199
    %v201 = vshll.u32 920167782, %v186
    %v202 = vshrl.u32 1326507024, %v187
    %v203 = vor.u32 %v201, %v202
    %vm204 = vcmp.lt.s32.totalorder %v185, 1
    %vm205 = vcmp.lt.s32.totalorder %v185, 2
    %vm206 = vcmp.lt.s32.totalorder %v185, 3
    %vm207 = vcmp.lt.s32.totalorder %v185, 4
    %v208 = vsel %vm204, %v188, %v191
    %v209 = vsel %vm207, %v197, 2102212464
    %v210 = vsel %vm206, %v194, %v209
    %v211 = vsel %vm205, %v208, %v210
    %v212 = vsel %vm204, %v191, %v194
    %v213 = vsel %vm207, %v200, 920167782
    %v214 = vsel %vm206, %v197, %v213
    %v215 = vsel %vm205, %v212, %v214
    %v216 = vsel %vm204, %v194, %v197
    %v217 = vsel %vm207, %v203, 1326507024
    %v218 = vsel %vm206, %v200, %v217
    %v219 = vsel %vm205, %v216, %v218
    %v220 = vshll.u32 %v180, 8
    %v221 = vmul.u32.u64.compose %v220, %v219
    %v222 = vextract.low.u32 %v221
    %v223 = vextract.high.u32 %v221
    %v224 = vmul.u32.u64.compose %v220, %v215
    %v225 = vextract.low.u32 %v224
    %v226 = vextract.high.u32 %v224
    %v227 = vmul.u32 %v220, %v211
    %v228 = vadd.s32 %v223, %v225
    %vm229 = vc.u32 %v223, %v225
    %v230 = vadd.s32 %v226, 1
    %v231 = vsel %vm229, %v230, %v226
    %v232 = vadd.s32 %v227, %v231
    %v233 = vadd.s32 %v232, 536870912
    %v234 = vshrl.u32 %v233, 30
    %v235 = vshll.u32 %v234, 30
    %v236 = vsub.s32 %v232, %v235
    %vm237 = vcmp.lt.s32.totalorder %v236, 0
    %v238 = vsub.s32 0, %v236
    %v239 = vsel %vm237, %v238, %v236
    %v240 = vclz %v239
    %v241 = vsub.s32 %v240, 2
    %vm242 = vcmp.gt.s32.totalorder 0, %v241
    %v243 = vsel %vm242, 0, %v241
    %v244 = vsub.s32 32, %v243
    %v245 = vshll.u32 %v236, %v243
    %v246 = vshrl.u32 %v228, %v244
    %v247 = vor.u32 %v245, %v246
    %v248 = vsub.s32 4294967266, %v243
    %v249 = vadd.s32 %v248, 127
    %v250 = vshll.u32 %v249, 23
    %v251 = vor.u32 4788187, %v250
    %v252 = vand.u32 2147483647, %v251
    %v254 = vcvt.s32.f32 %v247
    %v255 = vmul.f32 %v254, %v252
    %v256 = vxor.u32 %v255, 2147483648
    %v257 = vsel %vm174, %v256, %v255
    %v258 = vsub.s32 4, %v234
    %v259 = vsel %vm174, %v258, %v234
    %v260 = vsel %vm173, %v68, %v257
    %v261 = vsel %vm173, 0, %v259
    %v262 = vcosq.f32.pop %v260
    %v263 = vsinq.f32.pop %v260
    %vm264 = vweird.f32 %v68
    %v265 = vadd.s32 %v261, 3
    %v266 = vand.u32 %v265, 3
    %vm267 = vcmp.lt.s32.totalorder %v266, 2
    %vm268 = vcmp.eq.s32.totalorder %v266, 0
    %v269 = vxor.u32 %v263, 2147483648
    %v270 = vsel %vm268, %v262, %v269
    %vm271 = vcmp.eq.s32.totalorder %v266, 2
    %v272 = vxor.u32 %v262, 2147483648
    %v273 = vsel %vm271, %v272, %v263
    %v274 = vsel %vm267, %v270, %v273
    %v275 = vsel %vm264, nan, %v274
    %v276 = vmul.f32 %v53, %v66
    %v277 = vmul.f32 %v275, %v276
    %v278 = vmul.f32 %v55, %v66
    %v279 = vmul.f32 %v275, %v278
    %v280 = vmul.f32 %v57, %v66
    %v281 = vmul.f32 %v275, %v280
    %v282 = vmul.f32 %v171, %v171
    %v283 = vmul.f32 %v277, %v277
    %v284 = vadd.f32 %v282, %v283
    %v285 = vmul.f32 %v279, %v279
    %v286 = vadd.f32 %v284, %v285
    %v287 = vmul.f32 %v281, %v281
    %v288 = vadd.f32 %v286, %v287
    %v289 = vrsqrt.pop %v288
    %v290 = vmul.f32 %v171, %v289
    %v291 = vmul.f32 %v277, %v289
    %v292 = vmul.f32 %v279, %v289
    %v293 = vmul.f32 %v281, %v289
    %v294 = vmul.f32 %v290, %v290
    %v295 = vmul.f32 %v291, %v291
    %v296 = vmul.f32 %v292, %v292
    %v297 = vmul.f32 %v293, %v293
    %v298 = vmul.f32 %v290, %v291
    %v299 = vmul.f32 %v290, %v292
    %v300 = vmul.f32 %v290, %v293
    %v301 = vmul.f32 %v291, %v292
    %v302 = vmul.f32 %v291, %v293
    %v303 = vmul.f32 %v292, %v293
    %v304 = vadd.f32 %v294, %v295
    %v305 = vsub.f32 %v304, %v296
    %v306 = vsub.f32 %v305, %v297
    %v307 = vsub.f32 %v301, %v300
    %v308 = vmul.f32 %v307, 2.0
    %v309 = vadd.f32 %v299, %v302
    %v310 = vmul.f32 %v309, 2.0
    %v311 = vadd.f32 %v300, %v301
    %v312 = vmul.f32 %v311, 2.0
    %v313 = vsub.f32 %v294, %v295
    %v314 = vadd.f32 %v313, %v296
    %v315 = vsub.f32 %v314, %v297
    %v316 = vsub.f32 %v303, %v298
    %v317 = vmul.f32 %v316, 2.0
    %v318 = vsub.f32 %v302, %v299
    %v319 = vmul.f32 %v318, 2.0
    %v320 = vadd.f32 %v298, %v303
    %v321 = vmul.f32 %v320, 2.0
    %v322 = vsub.f32 %v313, %v296
    %v323 = vadd.f32 %v322, %v297
    %v324 = vld [vmem:[#allocation5] sm:$0xff]
    %s325 = scalar_lea.vmem [#allocation5], 8
    %v326 = vld [vmem:[%s325] sm:$0xff]
    %s327 = scalar_lea.vmem [#allocation5], 16
    %v328 = vld [vmem:[%s327] sm:$0xff]
    %v329 = vadd.f32 %v324, 1e-08
    %v330 = vadd.f32 %v326, 1e-08
    %v331 = vadd.f32 %v328, 1e-08
    %v332 = vmul.f32 %v329, %v329
    %v333 = vmul.f32 %v330, %v330
    %v334 = vadd.f32 %v332, %v333
    %v335 = vmul.f32 %v331, %v331
    %v336 = vadd.f32 %v334, %v335
    %v337 = vrsqrt.pop %v336
    %v338 = vmul.f32 %v336, %v337
    %v339 = vmul.f32 %v338, 0.5
    %v340 = vand.u32 2147483647, %v339
    %vm341 = vcmp.le.f32.partialorder %v340, 0.7853982
    %vm342 = vcmp.lt.s32.totalorder %v339, 0
    %v343 = vand.u32 %v339, 2139095040
    %v344 = vshrl.u32 %v343, 23
    %v345 = vsub.s32 %v344, 127
    %v346 = vand.u32 2147483647, %v339
    %v347 = vand.u32 %v346, 8388607
    %v348 = vor.u32 %v347, 8388608
    %v349 = vsub.s32 0, %v348
    %v350 = vadd.s32 %v345, 1
    %vm351 = vcmp.gt.s32.totalorder %v350, 0
    %v352 = vsel %vm351, %v350, 0
    %v353 = vshrl.u32 %v352, 5
    %v354 = vand.u32 %v352, 31
    %v355 = vsub.s32 32, %v354
    %v356 = vshrl.u32 683565275, %v355
    %v357 = vshll.u32 683565275, %v354
    %v358 = vshrl.u32 2475754826, %v355
    %v359 = vor.u32 %v357, %v358
    %v360 = vshll.u32 2475754826, %v354
    %v361 = vshrl.u32 2131351028, %v355
    %v362 = vor.u32 %v360, %v361
    %v363 = vshll.u32 2131351028, %v354
    %v364 = vshrl.u32 2102212464, %v355
    %v365 = vor.u32 %v363, %v364
    %v366 = vshll.u32 2102212464, %v354
    %v367 = vshrl.u32 920167782, %v355
    %v368 = vor.u32 %v366, %v367
    %v369 = vshll.u32 920167782, %v354
    %v370 = vshrl.u32 1326507024, %v355
    %v371 = vor.u32 %v369, %v370
    %vm372 = vcmp.lt.s32.totalorder %v353, 1
    %vm373 = vcmp.lt.s32.totalorder %v353, 2
    %vm374 = vcmp.lt.s32.totalorder %v353, 3
    %vm375 = vcmp.lt.s32.totalorder %v353, 4
    %v376 = vsel %vm372, %v356, %v359
    %v377 = vsel %vm375, %v365, 2102212464
    %v378 = vsel %vm374, %v362, %v377
    %v379 = vsel %vm373, %v376, %v378
    %v380 = vsel %vm372, %v359, %v362
    %v381 = vsel %vm375, %v368, 920167782
    %v382 = vsel %vm374, %v365, %v381
    %v383 = vsel %vm373, %v380, %v382
    %v384 = vsel %vm372, %v362, %v365
    %v385 = vsel %vm375, %v371, 1326507024
    %v386 = vsel %vm374, %v368, %v385
    %v387 = vsel %vm373, %v384, %v386
    %v388 = vshll.u32 %v348, 8
    %v389 = vmul.u32.u64.compose %v388, %v387
    %v390 = vextract.low.u32 %v389
    %v391 = vextract.high.u32 %v389
    %v392 = vmul.u32.u64.compose %v388, %v383
    %v393 = vextract.low.u32 %v392
    %v394 = vextract.high.u32 %v392
    %v395 = vmul.u32 %v388, %v379
    %v396 = vadd.s32 %v391, %v393
    %vm397 = vc.u32 %v391, %v393
    %v398 = vadd.s32 %v394, 1
    %v399 = vsel %vm397, %v398, %v394
    %v400 = vadd.s32 %v395, %v399
    %v401 = vadd.s32 %v400, 536870912
    %v402 = vshrl.u32 %v401, 30
    %v403 = vshll.u32 %v402, 30
    %v404 = vsub.s32 %v400, %v403
    %vm405 = vcmp.lt.s32.totalorder %v404, 0
    %v406 = vsub.s32 0, %v404
    %v407 = vsel %vm405, %v406, %v404
    %v408 = vclz %v407
    %v409 = vsub.s32 %v408, 2
    %vm410 = vcmp.gt.s32.totalorder 0, %v409
    %v411 = vsel %vm410, 0, %v409
    %v412 = vsub.s32 32, %v411
    %v413 = vshll.u32 %v404, %v411
    %v414 = vshrl.u32 %v396, %v412
    %v415 = vor.u32 %v413, %v414
    %v416 = vsub.s32 4294967266, %v411
    %v417 = vadd.s32 %v416, 127
    %v418 = vshll.u32 %v417, 23
    %v419 = vor.u32 4788187, %v418
    %v420 = vand.u32 2147483647, %v419
    %v422 = vcvt.s32.f32 %v415
    %v423 = vmul.f32 %v422, %v420
    %v424 = vxor.u32 %v423, 2147483648
    %v425 = vsel %vm342, %v424, %v423
    %v426 = vsub.s32 4, %v402
    %v427 = vsel %vm342, %v426, %v402
    %v428 = vsel %vm341, %v339, %v425
    %v429 = vsel %vm341, 0, %v427
    %v430 = vcosq.f32.pop %v428
    %v431 = vsinq.f32.pop %v428
    %vm432 = vweird.f32 %v339
    %v433 = vand.u32 %v429, 3
    %vm434 = vcmp.lt.s32.totalorder %v433, 2
    %vm435 = vcmp.eq.s32.totalorder %v433, 0
    %v436 = vxor.u32 %v431, 2147483648
    %v437 = vsel %vm435, %v430, %v436
    %vm438 = vcmp.eq.s32.totalorder %v433, 2
    %v439 = vxor.u32 %v430, 2147483648
    %v440 = vsel %vm438, %v439, %v431
    %v441 = vsel %vm434, %v437, %v440
    %v442 = vsel %vm432, nan, %v441
    %v443 = vand.u32 2147483647, %v339
    %vm444 = vcmp.le.f32.partialorder %v443, 0.7853982
    %vm445 = vcmp.lt.s32.totalorder %v339, 0
    %v446 = vand.u32 %v339, 2139095040
    %v447 = vshrl.u32 %v446, 23
    %v448 = vsub.s32 %v447, 127
    %v449 = vand.u32 2147483647, %v339
    %v450 = vand.u32 %v449, 8388607
    %v451 = vor.u32 %v450, 8388608
    %v452 = vsub.s32 0, %v451
    %v453 = vadd.s32 %v448, 1
    %vm454 = vcmp.gt.s32.totalorder %v453, 0
    %v455 = vsel %vm454, %v453, 0
    %v456 = vshrl.u32 %v455, 5
    %v457 = vand.u32 %v455, 31
    %v458 = vsub.s32 32, %v457
    %v459 = vshrl.u32 683565275, %v458
    %v460 = vshll.u32 683565275, %v457
    %v461 = vshrl.u32 2475754826, %v458
    %v462 = vor.u32 %v460, %v461
    %v463 = vshll.u32 2475754826, %v457
    %v464 = vshrl.u32 2131351028, %v458
    %v465 = vor.u32 %v463, %v464
    %v466 = vshll.u32 2131351028, %v457
    %v467 = vshrl.u32 2102212464, %v458
    %v468 = vor.u32 %v466, %v467
    %v469 = vshll.u32 2102212464, %v457
    %v470 = vshrl.u32 920167782, %v458
    %v471 = vor.u32 %v469, %v470
    %v472 = vshll.u32 920167782, %v457
    %v473 = vshrl.u32 1326507024, %v458
    %v474 = vor.u32 %v472, %v473
    %vm475 = vcmp.lt.s32.totalorder %v456, 1
    %vm476 = vcmp.lt.s32.totalorder %v456, 2
    %vm477 = vcmp.lt.s32.totalorder %v456, 3
    %vm478 = vcmp.lt.s32.totalorder %v456, 4
    %v479 = vsel %vm475, %v459, %v462
    %v480 = vsel %vm478, %v468, 2102212464
    %v481 = vsel %vm477, %v465, %v480
    %v482 = vsel %vm476, %v479, %v481
    %v483 = vsel %vm475, %v462, %v465
    %v484 = vsel %vm478, %v471, 920167782
    %v485 = vsel %vm477, %v468, %v484
    %v486 = vsel %vm476, %v483, %v485
    %v487 = vsel %vm475, %v465, %v468
    %v488 = vsel %vm478, %v474, 1326507024
    %v489 = vsel %vm477, %v471, %v488
    %v490 = vsel %vm476, %v487, %v489
    %v491 = vshll.u32 %v451, 8
    %v492 = vmul.u32.u64.compose %v491, %v490
    %v493 = vextract.low.u32 %v492
    %v494 = vextract.high.u32 %v492
    %v495 = vmul.u32.u64.compose %v491, %v486
    %v496 = vextract.low.u32 %v495
    %v497 = vextract.high.u32 %v495
    %v498 = vmul.u32 %v491, %v482
    %v499 = vadd.s32 %v494, %v496
    %vm500 = vc.u32 %v494, %v496
    %v501 = vadd.s32 %v497, 1
    %v502 = vsel %vm500, %v501, %v497
    %v503 = vadd.s32 %v498, %v502
    %v504 = vadd.s32 %v503, 536870912
    %v505 = vshrl.u32 %v504, 30
    %v506 = vshll.u32 %v505, 30
    %v507 = vsub.s32 %v503, %v506
    %vm508 = vcmp.lt.s32.totalorder %v507, 0
    %v509 = vsub.s32 0, %v507
    %v510 = vsel %vm508, %v509, %v507
    %v511 = vclz %v510
    %v512 = vsub.s32 %v511, 2
    %vm513 = vcmp.gt.s32.totalorder 0, %v512
    %v514 = vsel %vm513, 0, %v512
    %v515 = vsub.s32 32, %v514
    %v516 = vshll.u32 %v507, %v514
    %v517 = vshrl.u32 %v499, %v515
    %v518 = vor.u32 %v516, %v517
    %v519 = vsub.s32 4294967266, %v514
    %v520 = vadd.s32 %v519, 127
    %v521 = vshll.u32 %v520, 23
    %v522 = vor.u32 4788187, %v521
    %v523 = vand.u32 2147483647, %v522
    %v525 = vcvt.s32.f32 %v518
    %v526 = vmul.f32 %v525, %v523
    %v527 = vxor.u32 %v526, 2147483648
    %v528 = vsel %vm445, %v527, %v526
    %v529 = vsub.s32 4, %v505
    %v530 = vsel %vm445, %v529, %v505
    %v531 = vsel %vm444, %v339, %v528
    %v532 = vsel %vm444, 0, %v530
    %v533 = vcosq.f32.pop %v531
    %v534 = vsinq.f32.pop %v531
    %vm535 = vweird.f32 %v339
    %v536 = vadd.s32 %v532, 3
    %v537 = vand.u32 %v536, 3
    %vm538 = vcmp.lt.s32.totalorder %v537, 2
    %vm539 = vcmp.eq.s32.totalorder %v537, 0
    %v540 = vxor.u32 %v534, 2147483648
    %v541 = vsel %vm539, %v533, %v540
    %vm542 = vcmp.eq.s32.totalorder %v537, 2
    %v543 = vxor.u32 %v533, 2147483648
    %v544 = vsel %vm542, %v543, %v534
    %v545 = vsel %vm538, %v541, %v544
    %v546 = vsel %vm535, nan, %v545
    %v547 = vmul.f32 %v324, %v337
    %v548 = vmul.f32 %v546, %v547
    %v549 = vmul.f32 %v326, %v337
    %v550 = vmul.f32 %v546, %v549
    %v551 = vmul.f32 %v328, %v337
    %v552 = vmul.f32 %v546, %v551
    %v553 = vmul.f32 %v442, %v442
    %v554 = vmul.f32 %v548, %v548
    %v555 = vadd.f32 %v553, %v554
    %v556 = vmul.f32 %v550, %v550
    %v557 = vadd.f32 %v555, %v556
    %v558 = vmul.f32 %v552, %v552
    %v559 = vadd.f32 %v557, %v558
    %v560 = vrsqrt.pop %v559
    %v561 = vmul.f32 %v442, %v560
    %v562 = vmul.f32 %v548, %v560
    %v563 = vmul.f32 %v550, %v560
    %v564 = vmul.f32 %v552, %v560
    %v565 = vmul.f32 %v561, %v561
    %v566 = vmul.f32 %v562, %v562
    %v567 = vmul.f32 %v563, %v563
    %v568 = vmul.f32 %v564, %v564
    %v569 = vmul.f32 %v561, %v562
    %v570 = vmul.f32 %v561, %v563
    %v571 = vmul.f32 %v561, %v564
    %v572 = vmul.f32 %v562, %v563
    %v573 = vmul.f32 %v562, %v564
    %v574 = vmul.f32 %v563, %v564
    %v575 = vadd.f32 %v565, %v566
    %v576 = vsub.f32 %v575, %v567
    %v577 = vsub.f32 %v576, %v568
    %v578 = vsub.f32 %v572, %v571
    %v579 = vmul.f32 %v578, 2.0
    %v580 = vadd.f32 %v570, %v573
    %v581 = vmul.f32 %v580, 2.0
    %v582 = vadd.f32 %v571, %v572
    %v583 = vmul.f32 %v582, 2.0
    %v584 = vsub.f32 %v565, %v566
    %v585 = vadd.f32 %v584, %v567
    %v586 = vsub.f32 %v585, %v568
    %v587 = vsub.f32 %v574, %v569
    %v588 = vmul.f32 %v587, 2.0
    %v589 = vsub.f32 %v573, %v570
    %v590 = vmul.f32 %v589, 2.0
    %v591 = vadd.f32 %v569, %v574
    %v592 = vmul.f32 %v591, 2.0
    %v593 = vsub.f32 %v584, %v567
    %v594 = vadd.f32 %v593, %v568
    %v595 = vsub.f32 %v306, %v577
    %v596 = vmul.f32 %v595, %v595
    %v597 = vsub.f32 %v308, %v579
    %v598 = vmul.f32 %v597, %v597
    %v599 = vadd.f32 %v596, %v598
    %v600 = vsub.f32 %v310, %v581
    %v601 = vmul.f32 %v600, %v600
    %v602 = vadd.f32 %v599, %v601
    %v603 = vsub.f32 %v312, %v583
    %v604 = vmul.f32 %v603, %v603
    %v605 = vadd.f32 %v602, %v604
    %v606 = vsub.f32 %v315, %v586
    %v607 = vmul.f32 %v606, %v606
    %v608 = vadd.f32 %v605, %v607
    %v609 = vsub.f32 %v317, %v588
    %v610 = vmul.f32 %v609, %v609
    %v611 = vadd.f32 %v608, %v610
    %v612 = vsub.f32 %v319, %v590
    %v613 = vmul.f32 %v612, %v612
    %v614 = vadd.f32 %v611, %v613
    %v615 = vsub.f32 %v321, %v592
    %v616 = vmul.f32 %v615, %v615
    %v617 = vadd.f32 %v614, %v616
    %v618 = vsub.f32 %v323, %v594
    %v619 = vmul.f32 %v618, %v618
    %v620 = vadd.f32 %v617, %v619
    %v621 = vld [vmem:[#allocation7] sm:$0xff]
    %v622 = vadd.f32 %v621, %v620
    %623 = vst [vmem:[#allocation7] sm:$0xff] %v622
    // Predicated region
    $region22: #{tpu_custom_call.1} parent=1 // pred_check
      _
    $region23: #{tpu_custom_call.1} parent=1 // pred_check_branch
      %625 = sbr.rel (0) target = $region25
    $region24: #{tpu_custom_call.1} parent=1 // pred_region
      %s627 = ssub.s32 128, 128
      %628 = vsyncadd [#allocation4], %s627
      %s630 = sshll.u32 [#allocation7], 4
      %s631 = int_to_ptr.vmem [resolvable:$true] %s630
      %633 = dma.vmem_to_hbm [thread:$0]  %s631, 128, %s2, [#allocation4]
    $region25: #{tpu_custom_call.1} parent=1 // pred_fallthru
      _
    // Predicated region
    $region26: #{tpu_custom_call.1} parent=1 // pred_check
      _
    $region27: #{tpu_custom_call.1} parent=1 // pred_check_branch
      %635 = sbr.rel (0) target = $region29
    $region28: #{tpu_custom_call.1} parent=1 // pred_region
      %636 = dma.done [#allocation4], 128
    $region29: #{tpu_custom_call.1} parent=1 // pred_fallthru
      _
    %637 = vsyncpa [#allocation3], 1
    %638 = vsyncpa [#allocation6], 1
    %639 = vsyncpa [#allocation4], 1

</llo_original>
